<compile_context>
chip_gen: v6e
topology: v6e:2x2x1
jax: 0.10.0
libtpu: 0.0.40
codegen_flags: <defaults>
</compile_context>

<pallas_src>
import jax
import jax.numpy as jnp
import numpy as np
from jax import lax
from jax.experimental import pallas as pl
from jax.experimental.pallas import tpu as pltpu


def _attention_kernel(feat_ref, hid_ref, Uw_ref, Ww_ref, bias_ref, Aw_ref,
                      alpha_ref, ctx_ref):
    # feat_ref : (TB, L, E)  features for TB batch elements
    # hid_ref  : (TB, D)     hidden states
    # Uw_ref   : (E, A)      U weight, pre-transposed
    # Ww_ref   : (D, A)      W weight, pre-transposed
    # bias_ref : (1, A)      U_b + W_b folded (A_b dropped: no-op under softmax)
    # Aw_ref   : (1, A)      A weight as a row
    # alpha_ref: (TB, L)     lane-dense softmax weights
    # ctx_ref  : (TB, E)     alpha-weighted feature sums
    TB, L, E = feat_ref.shape
    A = Uw_ref.shape[1]

    feat = feat_ref[...]                                  # (TB, L, E)
    feat2d = feat.reshape(TB * L, E)                      # merge leading dims (layout-friendly, L=8)

    # u_hs = U(features): one (TB*L, E) @ (E, A) MXU matmul for the whole tile.
    u_hs = jnp.dot(feat2d, Uw_ref[...], preferred_element_type=jnp.float32)

    # w_ah = W(hidden) + (U_b + W_b): (TB, D) @ (D, A) MXU matmul.
    w_ah = jnp.dot(hid_ref[...], Ww_ref[...],
                   preferred_element_type=jnp.float32) + bias_ref[...]

    # combined_states = tanh(u_hs + w_ah.unsqueeze(1))
    combined = jnp.tanh(u_hs.reshape(TB, L, A) + w_ah[:, None, :])    # (TB, L, A)

    # attention_scores = A(combined).squeeze(2), as a VPU multiply + lane reduce so
    # the (TB, L) score tile stays lane-dense (avoids an N=1 MXU matmul and the
    # sublane-axis softmax it would force).
    scores = jnp.sum(combined * Aw_ref[...], axis=-1)                 # (TB, L)

    # softmax over L (the lane axis)
    m = jnp.max(scores, axis=-1, keepdims=True)                       # (TB, 1)
    e = jnp.exp(scores - m)                                           # (TB, L)
    denom = jnp.sum(e, axis=-1, keepdims=True)                        # (TB, 1)
    # NOTE: pl.reciprocal(..., approx=True) would use the (idle) EUP vrcp slot, but
    # its error exceeds the 1e-5 tolerance vs. the reference; keep the exact form.
    alpha = e * pl.reciprocal(denom, approx=False)                    # (TB, L)
    alpha_ref[...] = alpha

    # attention_weights = sum_L(features * alpha): done on the MXU as a single 2-D
    # matmul (TB, TB*L) @ (TB*L, E) against a block-diagonal alpha matrix
    # (row b holds alpha[b, :] in columns [b*L, (b+1)*L)), instead of an XLU
    # sublane reduction over L.
    TBL = TB * L
    rows = lax.broadcasted_iota(jnp.int32, (TB, TBL), 0)
    cols = lax.broadcasted_iota(jnp.int32, (TB, TBL), 1)
    in_block = (cols >= rows * L) & (cols < rows * L + L)
    alpha_rep = jnp.concatenate([alpha] * TB, axis=1)                 # [b, k*L+l] = alpha[b, l]
    weighted = jnp.where(in_block, alpha_rep, 0.0)                    # block-diagonal (TB, TB*L)
    ctx_ref[...] = jnp.dot(weighted, feat2d, preferred_element_type=jnp.float32)


def attention_forward(features, hidden_state, params, *, mxu_rows=256):
    """features: (B, L, E) f32; hidden_state: (B, D) f32.
    params: dict with U_w (A,E), U_b (A,), W_w (A,D), W_b (A,), A_w (1,A), A_b (1,).
    Returns (alpha (B, L), attention_weights (B, E))."""
    B, L, E = features.shape
    D = hidden_state.shape[1]
    A = params["U_w"].shape[0]

    # Batch-tile size: target `mxu_rows` rows (TB*L) feeding the U matmul
    # (256 fills the v6e/v7x MXU; on v5e this is simply a comfortably large tile).
    tb_target = max(1, mxu_rows // max(L, 1))
    if B <= tb_target:
        TB = B                                    # block spans the full batch dim
    else:
        TB = max(8, (tb_target // 8) * 8)         # keep blocks sublane-aligned
    num_tiles = pl.cdiv(B, TB)
    Bp = num_tiles * TB
    if Bp != B:                                   # zero-pad batch; padded rows are benign
        features = jnp.pad(features, ((0, Bp - B), (0, 0), (0, 0)))
        hidden_state = jnp.pad(hidden_state, ((0, Bp - B), (0, 0)))

    # Weight prep (glue in plain JAX): transpose so the kernel does x @ W,
    # fold U_b + W_b into one bias, drop A_b (constant shift under softmax).
    Uw_t = params["U_w"].T.astype(jnp.float32)                        # (E, A)
    Ww_t = params["W_w"].T.astype(jnp.float32)                        # (D, A)
    bias = (params["U_b"] + params["W_b"]).reshape(1, A).astype(jnp.float32)
    Aw_row = params["A_w"].reshape(1, A).astype(jnp.float32)

    # VMEM budget: double-buffered in/out blocks + resident weights, with headroom;
    # capped well under v7x's 64 MiB physical VMEM.
    elt = 4
    block_bytes = elt * (TB * L * E + TB * D + TB * L + TB * E)
    weight_bytes = elt * (E * A + D * A + 2 * A)
    vmem_limit = int(min(48 << 20, max(4 << 20, 4 * block_bytes + 2 * weight_bytes)))

    alpha, ctx = pl.pallas_call(
        _attention_kernel,
        out_shape=(
            jax.ShapeDtypeStruct((Bp, L), jnp.float32),
            jax.ShapeDtypeStruct((Bp, E), jnp.float32),
        ),
        grid_spec=pltpu.PrefetchScalarGridSpec(
            num_scalar_prefetch=0,
            grid=(num_tiles,),
            in_specs=[
                pl.BlockSpec((TB, L, E), lambda i: (i, 0, 0)),   # features
                pl.BlockSpec((TB, D), lambda i: (i, 0)),         # hidden_state
                pl.BlockSpec((E, A), lambda i: (0, 0)),          # U weight^T (resident)
                pl.BlockSpec((D, A), lambda i: (0, 0)),          # W weight^T (resident)
                pl.BlockSpec((1, A), lambda i: (0, 0)),          # folded bias U_b + W_b
                pl.BlockSpec((1, A), lambda i: (0, 0)),          # A weight row
            ],
            out_specs=[
                pl.BlockSpec((TB, L), lambda i: (i, 0)),         # alpha (lane-dense)
                pl.BlockSpec((TB, E), lambda i: (i, 0)),         # attention_weights
            ],
        ),
        compiler_params=pltpu.CompilerParams(
            dimension_semantics=("parallel",),
            vmem_limit_bytes=vmem_limit,
        ),
    )(features, hidden_state, Uw_t, Ww_t, bias, Aw_row)

    return alpha[:B], ctx[:B]


def _reference(features, hidden_state, params):
    u_hs = features @ params["U_w"].T + params["U_b"]                  # (B, L, A)
    w_ah = hidden_state @ params["W_w"].T + params["W_b"]              # (B, A)
    combined = jnp.tanh(u_hs + w_ah[:, None, :])
    scores = (combined @ params["A_w"].T + params["A_b"])[..., 0]      # (B, L)
    alpha = jax.nn.softmax(scores, axis=1)
    ctx = jnp.sum(features * alpha[:, :, None], axis=1)                # (B, E)
    return alpha, ctx


if __name__ == "__main__":
    # Small shapes consistent with the module:
    B, L = 2, 8           # batch, number of encoder regions
    E, D, A = 32, 32, 32  # encoder_dim, decoder_dim, attention_dim

    key = jax.random.PRNGKey(0)
    ks = jax.random.split(key, 8)
    params = {
        "U_w": jax.random.normal(ks[0], (A, E), jnp.float32) * 0.1,
        "U_b": jax.random.normal(ks[1], (A,), jnp.float32) * 0.1,
        "W_w": jax.random.normal(ks[2], (A, D), jnp.float32) * 0.1,
        "W_b": jax.random.normal(ks[3], (A,), jnp.float32) * 0.1,
        "A_w": jax.random.normal(ks[4], (1, A), jnp.float32) * 0.1,
        "A_b": jax.random.normal(ks[5], (1,), jnp.float32) * 0.1,
    }
    features = jax.random.normal(ks[6], (B, L, E), jnp.float32)
    hidden_state = jax.random.normal(ks[7], (B, D), jnp.float32)

    alpha, attn_w = attention_forward(features, hidden_state, params)
    jax.block_until_ready((alpha, attn_w))

    alpha_ref, attn_w_ref = _reference(features, hidden_state, params)
    assert alpha.shape == (B, L) and attn_w.shape == (B, E)
    np.testing.assert_allclose(np.asarray(alpha), np.asarray(alpha_ref), rtol=1e-5, atol=1e-5)
    np.testing.assert_allclose(np.asarray(attn_w), np.asarray(attn_w_ref), rtol=1e-5, atol=1e-5)

    print("KERNEL_OK")
</pallas_src>

<mosaic_0001>
module attributes {stable_mosaic.version = 11 : i64} {
  func.func @_attention_kernel(%arg0: i32, %arg1: memref<2x8x32xf32, #tpu.memory_space<vmem>>, %arg2: memref<2x32xf32, #tpu.memory_space<vmem>>, %arg3: memref<32x32xf32, #tpu.memory_space<vmem>>, %arg4: memref<32x32xf32, #tpu.memory_space<vmem>>, %arg5: memref<1x32xf32, #tpu.memory_space<vmem>>, %arg6: memref<1x32xf32, #tpu.memory_space<vmem>>, %arg7: memref<2x8xf32, #tpu.memory_space<vmem>>, %arg8: memref<2x32xf32, #tpu.memory_space<vmem>>) attributes {dimension_semantics = [#tpu.dimension_semantics<parallel>], iteration_bounds = array<i64: 1>, scalar_prefetch = 0 : i64, scratch_operands = 0 : i64, tpu.core_type = #tpu.core_type<tc>, window_params = [{transform_indices = @transform_0, window_bounds = array<i64: 2, 8, 32>}, {transform_indices = @transform_1, window_bounds = array<i64: 2, 32>}, {pipeline_mode = #tpu.pipeline_mode<synchronous>, transform_indices = @transform_2, window_bounds = array<i64: 32, 32>}, {pipeline_mode = #tpu.pipeline_mode<synchronous>, transform_indices = @transform_3, window_bounds = array<i64: 32, 32>}, {pipeline_mode = #tpu.pipeline_mode<synchronous>, transform_indices = @transform_4, window_bounds = array<i64: 1, 32>}, {pipeline_mode = #tpu.pipeline_mode<synchronous>, transform_indices = @transform_5, window_bounds = array<i64: 1, 32>}, {transform_indices = @transform_6, window_bounds = array<i64: 2, 8>}, {transform_indices = @transform_7, window_bounds = array<i64: 2, 32>}]} {
    %c0 = arith.constant 0 : index
    %c0_0 = arith.constant 0 : index
    %c0_1 = arith.constant 0 : index
    %0 = vector.load %arg1[%c0, %c0_0, %c0_1] : memref<2x8x32xf32, #tpu.memory_space<vmem>>, vector<2x8x32xf32>
    %1 = vector.shape_cast %0 : vector<2x8x32xf32> to vector<16x32xf32>
    %c0_2 = arith.constant 0 : index
    %c0_3 = arith.constant 0 : index
    %2 = vector.load %arg3[%c0_2, %c0_3] : memref<32x32xf32, #tpu.memory_space<vmem>>, vector<32x32xf32>
    %cst = arith.constant dense<0.000000e+00> : vector<16x32xf32>
    %3 = tpu.matmul %1, %2, %cst {dimension_numbers = #tpu.dot_dimension_numbers<[1], [0], [0], [1], [0, 0, 1, 1], [], []>} : vector<16x32xf32>, vector<32x32xf32>, vector<16x32xf32> -> vector<16x32xf32>
    %c0_4 = arith.constant 0 : index
    %c0_5 = arith.constant 0 : index
    %4 = vector.load %arg2[%c0_4, %c0_5] : memref<2x32xf32, #tpu.memory_space<vmem>>, vector<2x32xf32>
    %c0_6 = arith.constant 0 : index
    %c0_7 = arith.constant 0 : index
    %5 = vector.load %arg4[%c0_6, %c0_7] : memref<32x32xf32, #tpu.memory_space<vmem>>, vector<32x32xf32>
    %cst_8 = arith.constant dense<0.000000e+00> : vector<2x32xf32>
    %6 = tpu.matmul %4, %5, %cst_8 {dimension_numbers = #tpu.dot_dimension_numbers<[1], [0], [0], [1], [0, 0, 1, 1], [], []>} : vector<2x32xf32>, vector<32x32xf32>, vector<2x32xf32> -> vector<2x32xf32>
    %c0_9 = arith.constant 0 : index
    %c0_10 = arith.constant 0 : index
    %7 = vector.load %arg5[%c0_9, %c0_10] : memref<1x32xf32, #tpu.memory_space<vmem>>, vector<1x32xf32>
    %8 = vector.broadcast %7 : vector<1x32xf32> to vector<2x32xf32>
    %9 = arith.addf %6, %8 : vector<2x32xf32>
    %10 = vector.shape_cast %3 : vector<16x32xf32> to vector<2x8x32xf32>
    %11 = vector.shape_cast %9 : vector<2x32xf32> to vector<2x1x32xf32>
    %12 = vector.broadcast %11 : vector<2x1x32xf32> to vector<2x8x32xf32>
    %13 = arith.addf %10, %12 : vector<2x8x32xf32>
    %14 = math.tanh %13 : vector<2x8x32xf32>
    %c0_11 = arith.constant 0 : index
    %c0_12 = arith.constant 0 : index
    %15 = vector.load %arg6[%c0_11, %c0_12] : memref<1x32xf32, #tpu.memory_space<vmem>>, vector<1x32xf32>
    %16 = vector.shape_cast %15 : vector<1x32xf32> to vector<1x1x32xf32>
    %17 = vector.broadcast %16 : vector<1x1x32xf32> to vector<2x8x32xf32>
    %18 = arith.mulf %14, %17 : vector<2x8x32xf32>
    %cst_13 = arith.constant dense<0.000000e+00> : vector<2x8xf32>
    %19 = vector.multi_reduction <add>, %18, %cst_13 [2] : vector<2x8x32xf32> to vector<2x8xf32>
    %cst_14 = arith.constant dense<0xFF800000> : vector<2xf32>
    %20 = vector.multi_reduction <maximumf>, %19, %cst_14 [1] : vector<2x8xf32> to vector<2xf32>
    %21 = vector.shape_cast %20 : vector<2xf32> to vector<2x1xf32>
    %22 = vector.broadcast %21 : vector<2x1xf32> to vector<2x8xf32>
    %23 = arith.subf %19, %22 : vector<2x8xf32>
    %24 = math.exp %23 : vector<2x8xf32>
    %cst_15 = arith.constant dense<0.000000e+00> : vector<2xf32>
    %25 = vector.multi_reduction <add>, %24, %cst_15 [1] : vector<2x8xf32> to vector<2xf32>
    %26 = vector.shape_cast %25 : vector<2xf32> to vector<2x1xf32>
    %27 = tpu.reciprocal %26 : vector<2x1xf32> -> vector<2x1xf32>
    %28 = vector.broadcast %27 : vector<2x1xf32> to vector<2x8xf32>
    %29 = arith.mulf %24, %28 : vector<2x8xf32>
    %c0_16 = arith.constant 0 : index
    %c0_17 = arith.constant 0 : index
    %30 = vector.load %arg7[%c0_16, %c0_17] : memref<2x8xf32, #tpu.memory_space<vmem>>, vector<2x8xf32>
    tpu.vector_store %arg7[%c0_16, %c0_17], %29 {strides = array<i32>} : memref<2x8xf32, #tpu.memory_space<vmem>>, vector<2x8xf32>,
    %31 = tpu.iota {dimensions = array<i32: 0>} : vector<2x16xi32>
    %32 = tpu.iota {dimensions = array<i32: 1>} : vector<2x16xi32>
    %c8_i32 = arith.constant 8 : i32
    %33 = vector.broadcast %c8_i32 : i32 to vector<2x16xi32>
    %34 = arith.muli %31, %33 : vector<2x16xi32>
    %35 = arith.cmpi sge, %32, %34 : vector<2x16xi32>
    %c8_i32_18 = arith.constant 8 : i32
    %36 = vector.broadcast %c8_i32_18 : i32 to vector<2x16xi32>
    %37 = arith.muli %31, %36 : vector<2x16xi32>
    %c8_i32_19 = arith.constant 8 : i32
    %38 = vector.broadcast %c8_i32_19 : i32 to vector<2x16xi32>
    %39 = arith.addi %37, %38 : vector<2x16xi32>
    %40 = arith.cmpi slt, %32, %39 : vector<2x16xi32>
    %41 = arith.andi %35, %40 : vector<2x16xi1>
    %42 = tpu.concatenate %29, %29 in 1 : vector<2x8xf32>, vector<2x8xf32> -> vector<2x16xf32>
    %cst_20 = arith.constant 0.000000e+00 : f32
    %43 = vector.broadcast %cst_20 : f32 to vector<2x16xf32>
    %44 = arith.select %41, %42, %43 : vector<2x16xi1>, vector<2x16xf32>
    %cst_21 = arith.constant dense<0.000000e+00> : vector<2x32xf32>
    %45 = tpu.matmul %44, %1, %cst_21 {dimension_numbers = #tpu.dot_dimension_numbers<[1], [0], [0], [1], [0, 0, 1, 1], [], []>} : vector<2x16xf32>, vector<16x32xf32>, vector<2x32xf32> -> vector<2x32xf32>
    %c0_22 = arith.constant 0 : index
    %c0_23 = arith.constant 0 : index
    %46 = vector.load %arg8[%c0_22, %c0_23] : memref<2x32xf32, #tpu.memory_space<vmem>>, vector<2x32xf32>
    tpu.vector_store %arg8[%c0_22, %c0_23], %45 {strides = array<i32>} : memref<2x32xf32, #tpu.memory_space<vmem>>, vector<2x32xf32>,
    return
  }
  func.func @transform_0(%arg0: i32) -> (i32, i32, i32) {
    %c0_i32 = arith.constant 0 : i32
    %c0_i32_0 = arith.constant 0 : i32
    %c0_i32_1 = arith.constant 0 : i32
    return %arg0, %c0_i32, %c0_i32_0 : i32, i32, i32
  }
  func.func @transform_1(%arg0: i32) -> (i32, i32) {
    %c0_i32 = arith.constant 0 : i32
    %c0_i32_0 = arith.constant 0 : i32
    return %arg0, %c0_i32 : i32, i32
  }
  func.func @transform_2(%arg0: i32) -> (i32, i32) {
    %c0_i32 = arith.constant 0 : i32
    %c0_i32_0 = arith.constant 0 : i32
    %c0_i32_1 = arith.constant 0 : i32
    return %c0_i32, %c0_i32_0 : i32, i32
  }
  func.func @transform_3(%arg0: i32) -> (i32, i32) {
    %c0_i32 = arith.constant 0 : i32
    %c0_i32_0 = arith.constant 0 : i32
    %c0_i32_1 = arith.constant 0 : i32
    return %c0_i32, %c0_i32_0 : i32, i32
  }
  func.func @transform_4(%arg0: i32) -> (i32, i32) {
    %c0_i32 = arith.constant 0 : i32
    %c0_i32_0 = arith.constant 0 : i32
    %c0_i32_1 = arith.constant 0 : i32
    return %c0_i32, %c0_i32_0 : i32, i32
  }
  func.func @transform_5(%arg0: i32) -> (i32, i32) {
    %c0_i32 = arith.constant 0 : i32
    %c0_i32_0 = arith.constant 0 : i32
    %c0_i32_1 = arith.constant 0 : i32
    return %c0_i32, %c0_i32_0 : i32, i32
  }
  func.func @transform_6(%arg0: i32) -> (i32, i32) {
    %c0_i32 = arith.constant 0 : i32
    %c0_i32_0 = arith.constant 0 : i32
    return %arg0, %c0_i32 : i32, i32
  }
  func.func @transform_7(%arg0: i32) -> (i32, i32) {
    %c0_i32 = arith.constant 0 : i32
    %c0_i32_0 = arith.constant 0 : i32
    return %arg0, %c0_i32 : i32, i32
  }
}

</mosaic_0001>

<llo_original>
// kernel: tpu_custom_call.1
$region0: #{tpu_custom_call.1}
  #allocation0 [shape = 'u32[]', space=smem, size = 0x4, offset = 0x4, fixed_abs, tag = 'smem constant byte address 0x4 - core index']
  #allocation1 [shape = 'u32[144,128]{1,0:T(1,128)}', space=vmem, size = 0x12000, scoped, tag = 'internal scratch']
  %s0 = inlined_call_operand.hbm [shape: f32[2,8,32], index: 0, kind: input, shape index: {}]
  %s1 = inlined_call_operand.hbm [shape: f32[2,32], index: 1, kind: input, shape index: {}]
  %s2 = inlined_call_operand.hbm [shape: f32[32,32], index: 2, kind: input, shape index: {}]
  %s3 = inlined_call_operand.hbm [shape: f32[32,32], index: 3, kind: input, shape index: {}]
  %s4 = inlined_call_operand.vmem [shape: f32[1,32], index: 4, kind: input, shape index: {}]
  %s5 = inlined_call_operand.vmem [shape: f32[1,32], index: 5, kind: input, shape index: {}]
  %s6 = inlined_call_operand.hbm [shape: f32[2,8], index: 6, kind: output, shape index: {0}]
  %s7 = inlined_call_operand.hbm [shape: f32[2,32], index: 7, kind: output, shape index: {1}]
  %8 = xla_tuple %s6, %s7
  %s9 = sld [smem:[#allocation0]]
  $region58: #{tpu_custom_call.1} parent=0
    _
  %s11 = ssub.s32 1, %s9
  %s12 = scalar_select 0, %s11, %s9
  $region1: #{tpu_custom_call.1} parent=0
    #allocation2 [shape = 'u8[8192]{0}', space=vmem, size = 0x2000, scoped, tag = 'input window, operand 0, single buffered']
    #allocation3 [shape = 's32[1]{0}', space=sflag, size = 0x4, scoped, tag = 'scoped memory for tpu_custom_call.1']
    #allocation4 [shape = 's32[1]{0}', space=sflag, size = 0x4, scoped, tag = 'scoped memory for tpu_custom_call.1']
    #allocation5 [shape = 'u8[1024]{0}', space=vmem, size = 0x400, scoped, tag = 'input window, operand 1, single buffered']
    #allocation6 [shape = 's32[1]{0}', space=sflag, size = 0x4, scoped, tag = 'scoped memory for tpu_custom_call.1']
    #allocation7 [shape = 'u8[16384]{0}', space=vmem, size = 0x4000, scoped, tag = 'input window, operand 2, single buffered']
    #allocation8 [shape = 'u8[16384]{0}', space=vmem, size = 0x4000, scoped, tag = 'input window, operand 3, single buffered']
    #allocation9 [shape = 's32[1]{0}', space=sflag, size = 0x4, scoped, tag = 'scoped memory for tpu_custom_call.1']
    #allocation10 [shape = 'u8[1024]{0}', space=vmem, size = 0x400, scoped, tag = 'output window, operand 0, single buffered']
    #allocation11 [shape = 'u8[1024]{0}', space=vmem, size = 0x400, scoped, tag = 'output window, operand 1, single buffered']
    #allocation12 [shape = 's32[1]{0}', space=sflag, size = 0x4, scoped, tag = 'scoped memory for tpu_custom_call.1']
    %13 = vsyncpa [#allocation3], 0
    %14 = vsyncpa [#allocation6], 0
    %15 = vsyncpa [#allocation9], 0
    %16 = vsyncpa [#allocation4], 0
    %17 = vsyncpa [#allocation12], 0
    // Predicated region
    $region2: #{tpu_custom_call.1} parent=1 // pred_check
      _
    $region3: #{tpu_custom_call.1} parent=1 // pred_check_branch
      %19 = sbr.rel (0) target = $region5
    $region4: #{tpu_custom_call.1} parent=1 // pred_region
      %s21 = ssub.s32 256, 256
      %22 = vsyncadd [#allocation3], %s21
      %s23 = sshll.u32 [#allocation2], 4
      %s24 = int_to_ptr.vmem [resolvable:$true] %s23
      %29 = dma.hbm_to_vmem [thread:$0]  %s0, 256, %s24, [#allocation3], 128, 128, 8
    $region5: #{tpu_custom_call.1} parent=1 // pred_fallthru
      _
    // Predicated region
    $region6: #{tpu_custom_call.1} parent=1 // pred_check
      _
    $region7: #{tpu_custom_call.1} parent=1 // pred_check_branch
      %31 = sbr.rel (0) target = $region9
    $region8: #{tpu_custom_call.1} parent=1 // pred_region
      %s33 = ssub.s32 32, 32
      %34 = vsyncadd [#allocation6], %s33
      %s36 = sshll.u32 [#allocation5], 4
      %s37 = int_to_ptr.vmem [resolvable:$true] %s36
      %39 = dma.hbm_to_vmem [thread:$0]  %s1, 32, %s37, [#allocation6]
    $region9: #{tpu_custom_call.1} parent=1 // pred_fallthru
      _
    // Predicated region
    $region10: #{tpu_custom_call.1} parent=1 // pred_check
      _
    $region11: #{tpu_custom_call.1} parent=1 // pred_check_branch
      %41 = sbr.rel (0) target = $region13
    $region12: #{tpu_custom_call.1} parent=1 // pred_region
      %s43 = ssub.s32 512, 512
      %44 = vsyncadd [#allocation6], %s43
      %s45 = sshll.u32 [#allocation7], 4
      %s46 = int_to_ptr.vmem [resolvable:$true] %s45
      %51 = dma.hbm_to_vmem [thread:$0]  %s2, 512, %s46, [#allocation6], 128, 128, 8
    $region13: #{tpu_custom_call.1} parent=1 // pred_fallthru
      _
    // Predicated region
    $region14: #{tpu_custom_call.1} parent=1 // pred_check
      _
    $region15: #{tpu_custom_call.1} parent=1 // pred_check_branch
      %53 = sbr.rel (0) target = $region17
    $region16: #{tpu_custom_call.1} parent=1 // pred_region
      %s55 = ssub.s32 512, 512
      %56 = vsyncadd [#allocation9], %s55
      %s57 = sshll.u32 [#allocation8], 4
      %s58 = int_to_ptr.vmem [resolvable:$true] %s57
      %63 = dma.hbm_to_vmem [thread:$0]  %s3, 512, %s58, [#allocation9], 128, 128, 8
    $region17: #{tpu_custom_call.1} parent=1 // pred_fallthru
      _
    // Predicated region
    $region18: #{tpu_custom_call.1} parent=1 // pred_check
      _
    $region19: #{tpu_custom_call.1} parent=1 // pred_check_branch
      %65 = sbr.rel (0) target = $region21
    $region20: #{tpu_custom_call.1} parent=1 // pred_region
      _
    $region21: #{tpu_custom_call.1} parent=1 // pred_fallthru
      _
    // Predicated region
    $region22: #{tpu_custom_call.1} parent=1 // pred_check
      _
    $region23: #{tpu_custom_call.1} parent=1 // pred_check_branch
      %67 = sbr.rel (0) target = $region25
    $region24: #{tpu_custom_call.1} parent=1 // pred_region
      _
    $region25: #{tpu_custom_call.1} parent=1 // pred_fallthru
      _
    // Predicated region
    $region26: #{tpu_custom_call.1} parent=1 // pred_check
      _
    $region27: #{tpu_custom_call.1} parent=1 // pred_check_branch
      %69 = sbr.rel (0) target = $region29
    $region28: #{tpu_custom_call.1} parent=1 // pred_region
      %70 = dma.done [#allocation3], 256
    $region29: #{tpu_custom_call.1} parent=1 // pred_fallthru
      _
    // Predicated region
    $region30: #{tpu_custom_call.1} parent=1 // pred_check
      _
    $region31: #{tpu_custom_call.1} parent=1 // pred_check_branch
      %72 = sbr.rel (0) target = $region33
    $region32: #{tpu_custom_call.1} parent=1 // pred_region
      %73 = dma.done [#allocation6], 32
    $region33: #{tpu_custom_call.1} parent=1 // pred_fallthru
      _
    // Predicated region
    $region34: #{tpu_custom_call.1} parent=1 // pred_check
      _
    $region35: #{tpu_custom_call.1} parent=1 // pred_check_branch
      %75 = sbr.rel (0) target = $region37
    $region36: #{tpu_custom_call.1} parent=1 // pred_region
      %76 = dma.done [#allocation6], 512
    $region37: #{tpu_custom_call.1} parent=1 // pred_fallthru
      _
    // Predicated region
    $region38: #{tpu_custom_call.1} parent=1 // pred_check
      _
    $region39: #{tpu_custom_call.1} parent=1 // pred_check_branch
      %78 = sbr.rel (0) target = $region41
    $region40: #{tpu_custom_call.1} parent=1 // pred_region
      %79 = dma.done [#allocation9], 512
    $region41: #{tpu_custom_call.1} parent=1 // pred_fallthru
      _
    %v80 = vld [vmem:[#allocation2] sm:$0xff]
    %v81 = vld [vmem:[#allocation2 + $0x8] sm:$0xff]
    %v82 = vld [vmem:[#allocation7] sm:$0xff]
    %v83 = vld [vmem:[#allocation7 + $0x8] sm:$0xff]
    %v84 = vld [vmem:[#allocation7 + $0x10] sm:$0xff]
    %v85 = vld [vmem:[#allocation7 + $0x18] sm:$0xff]
    %vm86 = vcmask 261120
    %v88 = vsel %vm86, %v80, 0
    %v91 = vsel %vm86, %v81, 0
    %93 = vmatprep.subr.mxu0 0.0
    %94 = vmatpush1.msra.mxu0 0.0
    %95 = vmatprep.subr.mxu0 0.0
    %96 = vmatpush1.msra.mxu0 0.0
    %97 = vmatprep.subr.mxu0 0.0
    %98 = vmatpush1.msra.mxu0 0.0
    %99 = vmatprep.subr.mxu0 0.0
    %100 = vmatpush1.msra.mxu0 0.0
    %101 = vmatprep.subr.mxu0 0.0
    %102 = vmatpush1.msra.mxu0 0.0
    %103 = vmatprep.subr.mxu0 0.0
    %104 = vmatpush1.msra.mxu0 0.0
    %105 = vmatprep.subr.mxu0 0.0
    %106 = vmatpush1.msra.mxu0 0.0
    %107 = vmatprep.subr.mxu0 0.0
    %108 = vmatpush1.msra.mxu0 0.0
    %109 = vmatprep.subr.mxu0 0.0
    %110 = vmatpush1.msra.mxu0 0.0
    %111 = vmatprep.subr.mxu0 0.0
    %112 = vmatpush1.msra.mxu0 0.0
    %113 = vmatprep.subr.mxu0 0.0
    %114 = vmatpush1.msra.mxu0 0.0
    %115 = vmatprep.subr.mxu0 0.0
    %116 = vmatpush1.msra.mxu0 0.0
    %117 = vmatprep.subr.mxu0 0.0
    %118 = vmatpush1.msra.mxu0 %v85
    %119 = vmatprep.subr.mxu0 0.0
    %120 = vmatpush1.msra.mxu0 %v84
    %121 = vmatprep.subr.mxu0 0.0
    %122 = vmatpush1.msra.mxu0 %v83
    %123 = vmatprep.subr.mxu0 0.0
    %124 = vmatpush1.msra.mxu0 %v82
    %125 = vmatprep.subr.mxu0 0.0
    %126 = vmatpush2.msra.mxu0 0.0
    %127 = vmatprep.subr.mxu0 0.0
    %128 = vmatpush2.msra.mxu0 0.0
    %129 = vmatprep.subr.mxu0 0.0
    %130 = vmatpush2.msra.mxu0 0.0
    %131 = vmatprep.subr.mxu0 0.0
    %132 = vmatpush2.msra.mxu0 0.0
    %133 = vmatprep.subr.mxu0 0.0
    %134 = vmatpush2.msra.mxu0 0.0
    %135 = vmatprep.subr.mxu0 0.0
    %136 = vmatpush2.msra.mxu0 0.0
    %137 = vmatprep.subr.mxu0 0.0
    %138 = vmatpush2.msra.mxu0 0.0
    %139 = vmatprep.subr.mxu0 0.0
    %140 = vmatpush2.msra.mxu0 0.0
    %141 = vmatprep.subr.mxu0 0.0
    %142 = vmatpush2.msra.mxu0 0.0
    %143 = vmatprep.subr.mxu0 0.0
    %144 = vmatpush2.msra.mxu0 0.0
    %145 = vmatprep.subr.mxu0 0.0
    %146 = vmatpush2.msra.mxu0 0.0
    %147 = vmatprep.subr.mxu0 0.0
    %148 = vmatpush2.msra.mxu0 0.0
    %149 = vmatprep.subr.mxu0 0.0
    %150 = vmatpush2.msra.mxu0 0.0
    %151 = vmatprep.subr.mxu0 0.0
    %152 = vmatpush2.msra.mxu0 0.0
    %153 = vmatprep.subr.mxu0 0.0
    %154 = vmatpush2.msra.mxu0 0.0
    %155 = vmatprep.subr.mxu0 0.0
    %156 = vmatpush2.msra.mxu0 0.0
    %157 = vmatprep.mubr.f32.mxu0 0.0
    %158 = vmatmul.mubr.f32.gmra.mxu0 %v88
    %v159 = vpop.f32.mrf.mxu0
    %v160 = vadd.f32 0.0, %v159
    %v161 = vpop.f32.mrf.mxu0
    %162 = vmatprep.mubr.f32.mxu0 0.0
    %163 = vmatmul.mubr.f32.gmra.mxu0 %v91
    %v164 = vpop.f32.mrf.mxu0
    %v165 = vadd.f32 0.0, %v164
    %v166 = vpop.f32.mrf.mxu0
    %167 = vdwg.mxu0
    %v168 = vld [vmem:[#allocation5] sm:$0x3]
    %v169 = vld [vmem:[#allocation8] sm:$0xff]
    %v170 = vld [vmem:[#allocation8 + $0x8] sm:$0xff]
    %v171 = vld [vmem:[#allocation8 + $0x10] sm:$0xff]
    %v172 = vld [vmem:[#allocation8 + $0x18] sm:$0xff]
    %v173 = vld [vmem:[%s4] sm:$0x1]
    %v175 = vlaneseq
    %v176 = vshrl.u32 %v175, 7
    %v177 = vsub.s32 0, %v176
    %v178 = vrot.slane %v173, %v177
    %v181 = vsel %vm86, %v168, 0
    %183 = vmatprep.subr.mxu0 0.0
    %184 = vmatpush1.msra.mxu0 0.0
    %185 = vmatprep.subr.mxu0 0.0
    %186 = vmatpush1.msra.mxu0 0.0
    %187 = vmatprep.subr.mxu0 0.0
    %188 = vmatpush1.msra.mxu0 0.0
    %189 = vmatprep.subr.mxu0 0.0
    %190 = vmatpush1.msra.mxu0 0.0
    %191 = vmatprep.subr.mxu0 0.0
    %192 = vmatpush1.msra.mxu0 0.0
    %193 = vmatprep.subr.mxu0 0.0
    %194 = vmatpush1.msra.mxu0 0.0
    %195 = vmatprep.subr.mxu0 0.0
    %196 = vmatpush1.msra.mxu0 0.0
    %197 = vmatprep.subr.mxu0 0.0
    %198 = vmatpush1.msra.mxu0 0.0
    %199 = vmatprep.subr.mxu0 0.0
    %200 = vmatpush1.msra.mxu0 0.0
    %201 = vmatprep.subr.mxu0 0.0
    %202 = vmatpush1.msra.mxu0 0.0
    %203 = vmatprep.subr.mxu0 0.0
    %204 = vmatpush1.msra.mxu0 0.0
    %205 = vmatprep.subr.mxu0 0.0
    %206 = vmatpush1.msra.mxu0 0.0
    %207 = vmatprep.subr.mxu0 0.0
    %208 = vmatpush1.msra.mxu0 %v172
    %209 = vmatprep.subr.mxu0 0.0
    %210 = vmatpush1.msra.mxu0 %v171
    %211 = vmatprep.subr.mxu0 0.0
    %212 = vmatpush1.msra.mxu0 %v170
    %213 = vmatprep.subr.mxu0 0.0
    %214 = vmatpush1.msra.mxu0 %v169
    %215 = vmatprep.subr.mxu0 0.0
    %216 = vmatpush2.msra.mxu0 0.0
    %217 = vmatprep.subr.mxu0 0.0
    %218 = vmatpush2.msra.mxu0 0.0
    %219 = vmatprep.subr.mxu0 0.0
    %220 = vmatpush2.msra.mxu0 0.0
    %221 = vmatprep.subr.mxu0 0.0
    %222 = vmatpush2.msra.mxu0 0.0
    %223 = vmatprep.subr.mxu0 0.0
    %224 = vmatpush2.msra.mxu0 0.0
    %225 = vmatprep.subr.mxu0 0.0
    %226 = vmatpush2.msra.mxu0 0.0
    %227 = vmatprep.subr.mxu0 0.0
    %228 = vmatpush2.msra.mxu0 0.0
    %229 = vmatprep.subr.mxu0 0.0
    %230 = vmatpush2.msra.mxu0 0.0
    %231 = vmatprep.subr.mxu0 0.0
    %232 = vmatpush2.msra.mxu0 0.0
    %233 = vmatprep.subr.mxu0 0.0
    %234 = vmatpush2.msra.mxu0 0.0
    %235 = vmatprep.subr.mxu0 0.0
    %236 = vmatpush2.msra.mxu0 0.0
    %237 = vmatprep.subr.mxu0 0.0
    %238 = vmatpush2.msra.mxu0 0.0
    %239 = vmatprep.subr.mxu0 0.0
    %240 = vmatpush2.msra.mxu0 0.0
    %241 = vmatprep.subr.mxu0 0.0
    %242 = vmatpush2.msra.mxu0 0.0
    %243 = vmatprep.subr.mxu0 0.0
    %244 = vmatpush2.msra.mxu0 0.0
    %245 = vmatprep.subr.mxu0 0.0
    %246 = vmatpush2.msra.mxu0 0.0
    %247 = vmatprep.mubr.f32.mxu0 0.0
    %248 = vmatmul.mubr.f32.gmra.mxu0 %v181
    %v249 = vpop.f32.mrf.mxu0
    %v250 = vadd.f32 %v178, %v249
    %v251 = vpop.f32.mrf.mxu0
    %252 = vdwg.mxu0
    %v255 = vunpack.c.l.s4 1966171168
    %v256 = vunpack.c.0.s8 %v255
    %v257 = vlaneseq
    %v258 = vshrl.u32 %v257, 7
    %v259 = vsub.s32 %v256, %v258
    %v260 = vrot.slane %v250, %v259
    %v261 = vcombine.high %v260, %v260
    %v263 = vunpack.c.l.s4 1966171168
    %v264 = vunpack.c.0.s8 %v263
    %v265 = vlaneseq
    %v266 = vshrl.u32 %v265, 7
    %v267 = vsub.s32 %v264, %v266
    %v268 = vrot.slane %v260, %v267
    %v270 = vunpack.c.l.s4 1966171168
    %v271 = vunpack.c.0.s8 %v270
    %v272 = vlaneseq
    %v273 = vshrl.u32 %v272, 7
    %v274 = vsub.s32 %v271, %v273
    %v275 = vrot.slane %v261, %v274
    %v276 = vlaneseq
    %v277 = vshrl.u32 %v276, 7
    %v278 = vsub.s32 0, %v277
    %v279 = vrot.slane %v268, %v278
    %v280 = vlaneseq
    %v281 = vshrl.u32 %v280, 7
    %v282 = vsub.s32 0, %v281
    %v283 = vrot.slane %v275, %v282
    %v286 = vadd.f32 %v160, %v279
    %v287 = vadd.f32 %v165, %v283
    %v288 = vtanh.pop %v286
    %v289 = vtanh.pop %v287
    %v290 = vld [vmem:[%s5] sm:$0x1]
    %v292 = vlaneseq
    %v293 = vshrl.u32 %v292, 7
    %v294 = vsub.s32 0, %v293
    %v295 = vrot.slane %v290, %v294
    %v297 = vmul.f32 %v288, %v295
    %v298 = vmul.f32 %v289, %v295
    %v299 = vsel %vm86, %v297, 0.0
    %300 = vadd.xlane.f32.xlu0 %v299
    %v301 = vpop.xlane.xlu0 %300
    %v302 = vsel %vm86, %v298, 0.0
    %303 = vadd.xlane.f32.xlu0 %v302
    %v304 = vpop.xlane.xlu0 %303
    %v307 = vlaneseq
    %v308 = vand.u32 %v307, 127
    %v309 = vlaneseq
    %v310 = vshrl.u32 %v309, 7
    %v311 = vsub.s32 %v308, %v310
    %v312 = vrot.slane %v301, %v311
    %v313 = vlaneseq
    %v314 = vshrl.u32 %v313, 7
    %v315 = vsub.s32 %v308, %v314
    %v316 = vrot.slane %v304, %v315
    %vm317 = vcmask 1041409
    %v318 = vsel %vm317, %v316, %v312
    %vm320 = vcmask 58368
    %v321 = vsel %vm320, %v318, -inf
    %322 = vmax.xlane.f32.xlu0 %v321
    %v323 = vpop.xlane.xlu0 %322
    %v325 = vlaneseq
    %v326 = vshrl.u32 %v325, 7
    %v327 = vsub.s32 0, %v326
    %v328 = vrot.slane %v323, %v327
    %v329 = vlaneseq
    %v330 = vshrl.u32 %v329, 7
    %v331 = vsub.s32 1, %v330
    %v332 = vrot.slane %v323, %v331
    %v335 = vsub.f32 %v301, %v328
    %v336 = vsub.f32 %v304, %v332
    %v337 = vmul.f32 %v335, 1.442695
    %v338 = vpow.pop %v337
    %v339 = vmul.f32 %v336, 1.442695
    %v340 = vpow.pop %v339
    %343 = vset.pattern.permute.xlu0 0
    %344 = vperm.xlu0 %343, %v338
    %v345 = vpop.permute.xlu0 %344
    %346 = vset.pattern.permute.xlu0 0
    %347 = vperm.xlu0 %346, %v340
    %v348 = vpop.permute.xlu0 %347
    %v349 = vlaneseq
    %v350 = vshrl.u32 %v349, 7
    %v351 = vsub.s32 %v308, %v350
    %v352 = vrot.slane %v345, %v351
    %v353 = vlaneseq
    %v354 = vshrl.u32 %v353, 7
    %v355 = vsub.s32 %v308, %v354
    %v356 = vrot.slane %v348, %v355
    %v357 = vsel %vm317, %v356, %v352
    %v359 = vsel %vm320, %v357, 0.0
    %360 = vadd.xlane.f32.xlu0 %v359
    %v361 = vpop.xlane.xlu0 %360
    %v362 = vrcp.pop %v361
    %v364 = vlaneseq
    %v365 = vshrl.u32 %v364, 7
    %v366 = vsub.s32 0, %v365
    %v367 = vrot.slane %v362, %v366
    %v368 = vlaneseq
    %v369 = vshrl.u32 %v368, 7
    %v370 = vsub.s32 1, %v369
    %v371 = vrot.slane %v362, %v370
    %v374 = vmul.f32 %v338, %v367
    %v375 = vmul.f32 %v340, %v371
    %378 = vset.pattern.permute.xlu0 0
    %379 = vperm.xlu0 %378, %v374
    %v380 = vpop.permute.xlu0 %379
    %381 = vset.pattern.permute.xlu0 0
    %382 = vperm.xlu0 %381, %v375
    %v383 = vpop.permute.xlu0 %382
    %v384 = vlaneseq
    %v385 = vshrl.u32 %v384, 7
    %v386 = vsub.s32 %v308, %v385
    %v387 = vrot.slane %v380, %v386
    %v388 = vlaneseq
    %v389 = vshrl.u32 %v388, 7
    %v390 = vsub.s32 %v308, %v389
    %v391 = vrot.slane %v383, %v390
    %v392 = vsel %vm317, %v391, %v387
    %394 = vst.msk [vmem:[#allocation10] sm:$0x3] %vm320, %v392
    %v395 = vlaneseq
    %v396 = vshrl.u32 %v395, 7
    %v397 = vmul.u32 %v396, 8
    %vm398 = vcmp.ge.s32.totalorder %v308, %v397
    %v399 = vadd.s32 %v397, 8
    %vm400 = vcmp.lt.s32.totalorder %v308, %v399
    %vm401 = vmand %vm398, %vm400
    %v402 = vadd.s32 %v308, 4294967288
    %v403 = vlaneseq
    %v404 = vshrl.u32 %v403, 7
    %v405 = vsub.s32 %v402, %v404
    %v406 = vrot.slane %v380, %v405
    %v407 = vlaneseq
    %v408 = vshrl.u32 %v407, 7
    %v409 = vsub.s32 %v402, %v408
    %v410 = vrot.slane %v383, %v409
    %v411 = vsel %vm317, %v410, %v406
    %vm413 = vcmask 64512
    %v414 = vsel %vm413, %v392, %v411
    %v415 = vsel %vm401, %v414, 0.0
    %vm416 = vcmask 130048
    %v418 = vsel %vm416, %v415, 0
    %420 = vmatprep.subr.mxu0 0.0
    %421 = vmatpush1.msra.mxu0 0.0
    %422 = vmatprep.subr.mxu0 0.0
    %423 = vmatpush1.msra.mxu0 0.0
    %424 = vmatprep.subr.mxu0 0.0
    %425 = vmatpush1.msra.mxu0 0.0
    %426 = vmatprep.subr.mxu0 0.0
    %427 = vmatpush1.msra.mxu0 0.0
    %428 = vmatprep.subr.mxu0 0.0
    %429 = vmatpush1.msra.mxu0 0.0
    %430 = vmatprep.subr.mxu0 0.0
    %431 = vmatpush1.msra.mxu0 0.0
    %432 = vmatprep.subr.mxu0 0.0
    %433 = vmatpush1.msra.mxu0 0.0
    %434 = vmatprep.subr.mxu0 0.0
    %435 = vmatpush1.msra.mxu0 0.0
    %436 = vmatprep.subr.mxu0 0.0
    %437 = vmatpush1.msra.mxu0 0.0
    %438 = vmatprep.subr.mxu0 0.0
    %439 = vmatpush1.msra.mxu0 0.0
    %440 = vmatprep.subr.mxu0 0.0
    %441 = vmatpush1.msra.mxu0 0.0
    %442 = vmatprep.subr.mxu0 0.0
    %443 = vmatpush1.msra.mxu0 0.0
    %444 = vmatprep.subr.mxu0 0.0
    %445 = vmatpush1.msra.mxu0 0.0
    %446 = vmatprep.subr.mxu0 0.0
    %447 = vmatpush1.msra.mxu0 0.0
    %448 = vmatprep.subr.mxu0 0.0
    %449 = vmatpush1.msra.mxu0 %v81
    %450 = vmatprep.subr.mxu0 0.0
    %451 = vmatpush1.msra.mxu0 %v80
    %452 = vmatprep.subr.mxu0 0.0
    %453 = vmatpush2.msra.mxu0 0.0
    %454 = vmatprep.subr.mxu0 0.0
    %455 = vmatpush2.msra.mxu0 0.0
    %456 = vmatprep.subr.mxu0 0.0
    %457 = vmatpush2.msra.mxu0 0.0
    %458 = vmatprep.subr.mxu0 0.0
    %459 = vmatpush2.msra.mxu0 0.0
    %460 = vmatprep.subr.mxu0 0.0
    %461 = vmatpush2.msra.mxu0 0.0
    %462 = vmatprep.subr.mxu0 0.0
    %463 = vmatpush2.msra.mxu0 0.0
    %464 = vmatprep.subr.mxu0 0.0
    %465 = vmatpush2.msra.mxu0 0.0
    %466 = vmatprep.subr.mxu0 0.0
    %467 = vmatpush2.msra.mxu0 0.0
    %468 = vmatprep.subr.mxu0 0.0
    %469 = vmatpush2.msra.mxu0 0.0
    %470 = vmatprep.subr.mxu0 0.0
    %471 = vmatpush2.msra.mxu0 0.0
    %472 = vmatprep.subr.mxu0 0.0
    %473 = vmatpush2.msra.mxu0 0.0
    %474 = vmatprep.subr.mxu0 0.0
    %475 = vmatpush2.msra.mxu0 0.0
    %476 = vmatprep.subr.mxu0 0.0
    %477 = vmatpush2.msra.mxu0 0.0
    %478 = vmatprep.subr.mxu0 0.0
    %479 = vmatpush2.msra.mxu0 0.0
    %480 = vmatprep.subr.mxu0 0.0
    %481 = vmatpush2.msra.mxu0 0.0
    %482 = vmatprep.subr.mxu0 0.0
    %483 = vmatpush2.msra.mxu0 0.0
    %484 = vmatprep.mubr.f32.mxu0 0.0
    %485 = vmatmul.mubr.f32.gmra.mxu0 %v418
    %v486 = vpop.f32.mrf.mxu0
    %v487 = vadd.f32 0.0, %v486
    %v488 = vpop.f32.mrf.mxu0
    %489 = vdwg.mxu0
    %vm490 = vcmask 254976
    %491 = vst.msk [vmem:[#allocation11] sm:$0x3] %vm490, %v487
    // Predicated region
    $region42: #{tpu_custom_call.1} parent=1 // pred_check
      _
    $region43: #{tpu_custom_call.1} parent=1 // pred_check_branch
      %493 = sbr.rel (0) target = $region45
    $region44: #{tpu_custom_call.1} parent=1 // pred_region
      %s495 = ssub.s32 32, 32
      %496 = vsyncadd [#allocation4], %s495
      %s498 = sshll.u32 [#allocation10], 4
      %s499 = int_to_ptr.vmem [resolvable:$true] %s498
      %501 = dma.vmem_to_hbm [thread:$0]  %s499, 32, %s6, [#allocation4]
    $region45: #{tpu_custom_call.1} parent=1 // pred_fallthru
      _
    // Predicated region
    $region46: #{tpu_custom_call.1} parent=1 // pred_check
      _
    $region47: #{tpu_custom_call.1} parent=1 // pred_check_branch
      %503 = sbr.rel (0) target = $region49
    $region48: #{tpu_custom_call.1} parent=1 // pred_region
      %s505 = ssub.s32 32, 32
      %506 = vsyncadd [#allocation12], %s505
      %s508 = sshll.u32 [#allocation11], 4
      %s509 = int_to_ptr.vmem [resolvable:$true] %s508
      %511 = dma.vmem_to_hbm [thread:$0]  %s509, 32, %s7, [#allocation12]
    $region49: #{tpu_custom_call.1} parent=1 // pred_fallthru
      _
    // Predicated region
    $region50: #{tpu_custom_call.1} parent=1 // pred_check
      _
    $region51: #{tpu_custom_call.1} parent=1 // pred_check_branch
      %513 = sbr.rel (0) target = $region53
    $region52: #{tpu_custom_call.1} parent=1 // pred_region
      %514 = dma.done [#allocation4], 32
    $region53: #{tpu_custom_call.1} parent=1 // pred_fallthru
      _
    // Predicated region
    $region54: #{tpu_custom_call.1} parent=1 // pred_check
      _
    $region55: #{tpu_custom_call.1} parent=1 // pred_check_branch
      %516 = sbr.rel (0) target = $region57
    $region56: #{tpu_custom_call.1} parent=1 // pred_region
      %517 = dma.done [#allocation12], 32
    $region57: #{tpu_custom_call.1} parent=1 // pred_fallthru
      _
    %518 = vsyncpa [#allocation3], 1
    %519 = vsyncpa [#allocation6], 1
    %520 = vsyncpa [#allocation9], 1
    %521 = vsyncpa [#allocation4], 1
    %522 = vsyncpa [#allocation12], 1

</llo_original>
